<compile_context>
chip_gen: v5e
topology: v5e:2x2
jax: 0.10.0
libtpu: 0.0.40
codegen_flags: <defaults>
</compile_context>

<pallas_src>
import jax
import jax.numpy as jnp
import numpy as np
from jax.experimental import pallas as pl
from jax.experimental.pallas import tpu as pltpu

# --- special token ids (synthetic SpecialToken enum) ---
PAD_ID = 0
MASK_ID = 1
UNK_ID = 2

# --- problem sizes (toy but module-consistent) ---
B, S = 2, 8           # batch, sequence
N = B * S             # flattened rows
D = 128               # emb_dim (multiple of 128 -> lane-dense output stores)
V = 32                # roadnet vocab_size
TN = N                # row tile: whole problem in one grid step at this size


def traj_embedding_kernel(coords_ref, ids_ref, gps_w_ref, gps_b_ref,
                          emb_table_ref, unk_ref, mask_ref, out_ref):
    ids = ids_ref[...]                                   # (TN, 1) int32
    pad_pos = ids == PAD_ID
    mask_pos = ids == MASK_ID
    unk_pos = ids == UNK_ID
    special = pad_pos | mask_pos

    # --- RoadnetEmbedding: lookup as one-hot @ table on the MXU (exact; precision pinned).
    # TODO(synk): for large V replace with a scalar-prefetch / DMA row gather instead of
    # materializing the (TN, V) one-hot and holding the whole table in VMEM.
    safe_ids = jnp.where(special | unk_pos, 0, ids)                        # (TN, 1)
    vocab_iota = jax.lax.broadcasted_iota(jnp.int32, (TN, V), 1)           # (TN, V)
    one_hot = (vocab_iota == safe_ids).astype(jnp.float32)                 # (TN, V)
    road_emb = jnp.dot(one_hot, emb_table_ref[...],
                       preferred_element_type=jnp.float32,
                       precision=jax.lax.Precision.HIGHEST)                # (TN, D)
    road_emb = jnp.where(unk_pos, unk_ref[...], road_emb)                  # unk replacement

    # --- GPSEmbedding: Linear(2, D) as VPU broadcast-FMAs (no MXU round-trip for K=2) ---
    coords = coords_ref[...]                                               # (TN, 2)
    gps_emb = (coords[:, 0:1] * gps_w_ref[0:1, :]
               + coords[:, 1:2] * gps_w_ref[1:2, :]
               + gps_b_ref[...])                                           # (TN, D)

    # --- sum over tokens, fused pad / mask overwrite (pad_emb is frozen zeros -> 0.0) ---
    x = gps_emb + road_emb
    x = jnp.where(mask_pos, mask_ref[...], jnp.where(pad_pos, 0.0, x))
    out_ref[...] = x


def traj_embedding(coords, road_ids, gps_w, gps_b, emb_table, unk_emb, mask_emb):
    """coords: (B, S, 2) f32; road_ids: (B, S) int32 -> (B, S, D) f32."""
    coords_flat = coords.reshape(N, 2).astype(jnp.float32)
    ids_flat = road_ids.reshape(N, 1).astype(jnp.int32)

    out = pl.pallas_call(
        traj_embedding_kernel,
        out_shape=jax.ShapeDtypeStruct((N, D), jnp.float32),
        grid_spec=pltpu.PrefetchScalarGridSpec(
            num_scalar_prefetch=0,
            grid=(N // TN,),                              # == (1,) at this size
            in_specs=[
                pl.BlockSpec((TN, 2), lambda i: (i, 0)),  # coords rows
                pl.BlockSpec((TN, 1), lambda i: (i, 0)),  # road ids rows
                pl.BlockSpec((2, D), lambda i: (0, 0)),   # gps weight (already transposed)
                pl.BlockSpec((1, D), lambda i: (0, 0)),   # gps bias
                pl.BlockSpec((V, D), lambda i: (0, 0)),   # roadnet embedding table
                pl.BlockSpec((1, D), lambda i: (0, 0)),   # unk_emb
                pl.BlockSpec((1, D), lambda i: (0, 0)),   # mask_emb
            ],
            out_specs=pl.BlockSpec((TN, D), lambda i: (i, 0)),
        ),
        # single-step grid: no point sharding it across cores; flip the row axis to
        # "parallel" once N is large enough for the grid to be non-trivial.
        compiler_params=pltpu.CompilerParams(
            dimension_semantics=("arbitrary",)),
    )(coords_flat, ids_flat, gps_w, gps_b, emb_table, unk_emb, mask_emb)

    return out.reshape(B, S, D)


def traj_embedding_ref(coords, road_ids, gps_w, gps_b, emb_table, unk_emb, mask_emb):
    """Pure-JAX reference mirroring the PyTorch forward (pad_emb is frozen zeros)."""
    pad_pos = road_ids == PAD_ID
    mask_pos = road_ids == MASK_ID
    unk_pos = road_ids == UNK_ID
    special = pad_pos | mask_pos

    gps = jnp.dot(coords, gps_w, precision=jax.lax.Precision.HIGHEST) + gps_b[0]
    safe_ids = jnp.where(special | unk_pos, 0, road_ids)
    road = emb_table[safe_ids]                                    # (B, S, D)
    road = jnp.where(unk_pos[..., None], unk_emb[0], road)
    x = gps + road
    x = jnp.where(pad_pos[..., None], 0.0, x)                     # pad_emb == zeros
    x = jnp.where(mask_pos[..., None], mask_emb[0], x)
    return x


if __name__ == "__main__":
    key = jax.random.PRNGKey(0)
    k_coords, k_ids, k_gw, k_gb, k_tab, k_unk, k_mask = jax.random.split(key, 7)

    # --- deterministic parameter init (shapes from the module __init__) ---
    gps_w = jax.random.normal(k_gw, (2, D), jnp.float32) * 0.1    # Linear(2, D).weight.T
    gps_b = jax.random.normal(k_gb, (1, D), jnp.float32) * 0.1    # Linear(2, D).bias
    emb_table = jax.random.normal(k_tab, (V, D), jnp.float32)     # nn.Embedding(V, D)
    unk_emb = jax.random.normal(k_unk, (1, D), jnp.float32)       # GraphEmbedding.unk_emb
    mask_emb = jax.random.normal(k_mask, (1, D), jnp.float32)     # TrajEmbedding.mask_emb
    # TrajEmbedding.pad_emb is a frozen all-zeros parameter -> folded into the kernel.

    # --- deterministic inputs ---
    coords = jax.random.normal(k_coords, (B, S, 2), jnp.float32)
    road_ids = jax.random.randint(k_ids, (B, S), 3, V, jnp.int32)
    # sprinkle in special tokens for coverage
    road_ids = road_ids.at[0, 0].set(PAD_ID)
    road_ids = road_ids.at[0, 1].set(MASK_ID)
    road_ids = road_ids.at[1, 2].set(UNK_ID)
    road_ids = road_ids.at[1, 7].set(PAD_ID)

    out = traj_embedding(coords, road_ids, gps_w, gps_b, emb_table, unk_emb, mask_emb)
    out = jax.block_until_ready(out)

    ref = traj_embedding_ref(coords, road_ids, gps_w, gps_b, emb_table, unk_emb, mask_emb)
    np.testing.assert_allclose(np.asarray(out), np.asarray(ref), rtol=1e-5, atol=1e-5)

    print("KERNEL_OK")
</pallas_src>

<mosaic_0001>
module attributes {stable_mosaic.version = 11 : i64} {
  func.func @traj_embedding_kernel(%arg0: i32, %arg1: memref<16x2xf32, #tpu.memory_space<vmem>>, %arg2: memref<16x1xi32, #tpu.memory_space<vmem>>, %arg3: memref<2x128xf32, #tpu.memory_space<vmem>>, %arg4: memref<1x128xf32, #tpu.memory_space<vmem>>, %arg5: memref<32x128xf32, #tpu.memory_space<vmem>>, %arg6: memref<1x128xf32, #tpu.memory_space<vmem>>, %arg7: memref<1x128xf32, #tpu.memory_space<vmem>>, %arg8: memref<16x128xf32, #tpu.memory_space<vmem>>) attributes {dimension_semantics = [#tpu.dimension_semantics<arbitrary>], iteration_bounds = array<i64: 1>, scalar_prefetch = 0 : i64, scratch_operands = 0 : i64, tpu.core_type = #tpu.core_type<tc>, window_params = [{transform_indices = @transform_0, window_bounds = array<i64: 16, 2>}, {transform_indices = @transform_1, window_bounds = array<i64: 16, 1>}, {pipeline_mode = #tpu.pipeline_mode<synchronous>, transform_indices = @transform_2, window_bounds = array<i64: 2, 128>}, {pipeline_mode = #tpu.pipeline_mode<synchronous>, transform_indices = @transform_3, window_bounds = array<i64: 1, 128>}, {pipeline_mode = #tpu.pipeline_mode<synchronous>, transform_indices = @transform_4, window_bounds = array<i64: 32, 128>}, {pipeline_mode = #tpu.pipeline_mode<synchronous>, transform_indices = @transform_5, window_bounds = array<i64: 1, 128>}, {pipeline_mode = #tpu.pipeline_mode<synchronous>, transform_indices = @transform_6, window_bounds = array<i64: 1, 128>}, {transform_indices = @transform_7, window_bounds = array<i64: 16, 128>}]} {
    %c0 = arith.constant 0 : index
    %c0_0 = arith.constant 0 : index
    %0 = vector.load %arg2[%c0, %c0_0] : memref<16x1xi32, #tpu.memory_space<vmem>>, vector<16x1xi32>
    %c0_i32 = arith.constant 0 : i32
    %1 = vector.broadcast %c0_i32 : i32 to vector<16x1xi32>
    %2 = arith.cmpi eq, %0, %1 : vector<16x1xi32>
    %c1_i32 = arith.constant 1 : i32
    %3 = vector.broadcast %c1_i32 : i32 to vector<16x1xi32>
    %4 = arith.cmpi eq, %0, %3 : vector<16x1xi32>
    %c2_i32 = arith.constant 2 : i32
    %5 = vector.broadcast %c2_i32 : i32 to vector<16x1xi32>
    %6 = arith.cmpi eq, %0, %5 : vector<16x1xi32>
    %7 = arith.ori %2, %4 : vector<16x1xi1>
    %8 = arith.ori %7, %6 : vector<16x1xi1>
    %c0_i32_1 = arith.constant 0 : i32
    %9 = vector.broadcast %c0_i32_1 : i32 to vector<16x1xi32>
    %10 = arith.select %8, %9, %0 : vector<16x1xi1>, vector<16x1xi32>
    %11 = tpu.iota {dimensions = array<i32: 1>} : vector<16x32xi32>
    %12 = vector.broadcast %10 : vector<16x1xi32> to vector<16x32xi32>
    %13 = arith.cmpi eq, %11, %12 : vector<16x32xi32>
    %14 = arith.extui %13 : vector<16x32xi1> to vector<16x32xi32>
    %15 = arith.sitofp %14 : vector<16x32xi32> to vector<16x32xf32>
    %c0_2 = arith.constant 0 : index
    %c0_3 = arith.constant 0 : index
    %16 = vector.load %arg5[%c0_2, %c0_3] : memref<32x128xf32, #tpu.memory_space<vmem>>, vector<32x128xf32>
    %cst = arith.constant dense<0.000000e+00> : vector<16x128xf32>
    %17 = tpu.matmul %15, %16, %cst {dimension_numbers = #tpu.dot_dimension_numbers<[1], [0], [0], [1], [0, 0, 1, 1], [], []>, precision = #tpu.contract_precision<fp32>} : vector<16x32xf32>, vector<32x128xf32>, vector<16x128xf32> -> vector<16x128xf32>
    %c0_4 = arith.constant 0 : index
    %c0_5 = arith.constant 0 : index
    %18 = vector.load %arg6[%c0_4, %c0_5] : memref<1x128xf32, #tpu.memory_space<vmem>>, vector<1x128xf32>
    %19 = vector.shape_cast %6 : vector<16x1xi1> to vector<16x1xi1>
    %20 = vector.broadcast %19 : vector<16x1xi1> to vector<16x128xi1>
    %21 = vector.shape_cast %18 : vector<1x128xf32> to vector<1x128xf32>
    %22 = vector.broadcast %21 : vector<1x128xf32> to vector<16x128xf32>
    %23 = arith.select %20, %22, %17 : vector<16x128xi1>, vector<16x128xf32>
    %c0_6 = arith.constant 0 : index
    %c0_7 = arith.constant 0 : index
    %24 = vector.load %arg1[%c0_6, %c0_7] : memref<16x2xf32, #tpu.memory_space<vmem>>, vector<16x2xf32>
    %25 = vector.extract_strided_slice %24 {offsets = [0, 0], sizes = [16, 1], strides = [1, 1]} : vector<16x2xf32> to vector<16x1xf32>
    %c0_8 = arith.constant 0 : index
    %c0_9 = arith.constant 0 : index
    %26 = vector.load %arg3[%c0_8, %c0_9] : memref<2x128xf32, #tpu.memory_space<vmem>>, vector<1x128xf32>
    %27 = vector.broadcast %25 : vector<16x1xf32> to vector<16x128xf32>
    %28 = vector.broadcast %26 : vector<1x128xf32> to vector<16x128xf32>
    %29 = arith.mulf %27, %28 : vector<16x128xf32>
    %30 = vector.extract_strided_slice %24 {offsets = [0, 1], sizes = [16, 1], strides = [1, 1]} : vector<16x2xf32> to vector<16x1xf32>
    %c1 = arith.constant 1 : index
    %c0_10 = arith.constant 0 : index
    %31 = vector.load %arg3[%c1, %c0_10] : memref<2x128xf32, #tpu.memory_space<vmem>>, vector<1x128xf32>
    %32 = vector.broadcast %30 : vector<16x1xf32> to vector<16x128xf32>
    %33 = vector.broadcast %31 : vector<1x128xf32> to vector<16x128xf32>
    %34 = arith.mulf %32, %33 : vector<16x128xf32>
    %35 = arith.addf %29, %34 : vector<16x128xf32>
    %c0_11 = arith.constant 0 : index
    %c0_12 = arith.constant 0 : index
    %36 = vector.load %arg4[%c0_11, %c0_12] : memref<1x128xf32, #tpu.memory_space<vmem>>, vector<1x128xf32>
    %37 = vector.broadcast %36 : vector<1x128xf32> to vector<16x128xf32>
    %38 = arith.addf %35, %37 : vector<16x128xf32>
    %39 = arith.addf %38, %23 : vector<16x128xf32>
    %c0_13 = arith.constant 0 : index
    %c0_14 = arith.constant 0 : index
    %40 = vector.load %arg7[%c0_13, %c0_14] : memref<1x128xf32, #tpu.memory_space<vmem>>, vector<1x128xf32>
    %cst_15 = arith.constant 0.000000e+00 : f32
    %41 = vector.shape_cast %2 : vector<16x1xi1> to vector<16x1xi1>
    %42 = vector.broadcast %41 : vector<16x1xi1> to vector<16x128xi1>
    %43 = vector.broadcast %cst_15 : f32 to vector<16x128xf32>
    %44 = arith.select %42, %43, %39 : vector<16x128xi1>, vector<16x128xf32>
    %45 = vector.shape_cast %4 : vector<16x1xi1> to vector<16x1xi1>
    %46 = vector.broadcast %45 : vector<16x1xi1> to vector<16x128xi1>
    %47 = vector.shape_cast %40 : vector<1x128xf32> to vector<1x128xf32>
    %48 = vector.broadcast %47 : vector<1x128xf32> to vector<16x128xf32>
    %49 = arith.select %46, %48, %44 : vector<16x128xi1>, vector<16x128xf32>
    %c0_16 = arith.constant 0 : index
    %c0_17 = arith.constant 0 : index
    %50 = vector.load %arg8[%c0_16, %c0_17] : memref<16x128xf32, #tpu.memory_space<vmem>>, vector<16x128xf32>
    tpu.vector_store %arg8[%c0_16, %c0_17], %49 {strides = array<i32>} : memref<16x128xf32, #tpu.memory_space<vmem>>, vector<16x128xf32>,
    return
  }
  func.func @transform_0(%arg0: i32) -> (i32, i32) {
    %c0_i32 = arith.constant 0 : i32
    %c0_i32_0 = arith.constant 0 : i32
    return %arg0, %c0_i32 : i32, i32
  }
  func.func @transform_1(%arg0: i32) -> (i32, i32) {
    %c0_i32 = arith.constant 0 : i32
    %c0_i32_0 = arith.constant 0 : i32
    return %arg0, %c0_i32 : i32, i32
  }
  func.func @transform_2(%arg0: i32) -> (i32, i32) {
    %c0_i32 = arith.constant 0 : i32
    %c0_i32_0 = arith.constant 0 : i32
    %c0_i32_1 = arith.constant 0 : i32
    return %c0_i32, %c0_i32_0 : i32, i32
  }
  func.func @transform_3(%arg0: i32) -> (i32, i32) {
    %c0_i32 = arith.constant 0 : i32
    %c0_i32_0 = arith.constant 0 : i32
    %c0_i32_1 = arith.constant 0 : i32
    return %c0_i32, %c0_i32_0 : i32, i32
  }
  func.func @transform_4(%arg0: i32) -> (i32, i32) {
    %c0_i32 = arith.constant 0 : i32
    %c0_i32_0 = arith.constant 0 : i32
    %c0_i32_1 = arith.constant 0 : i32
    return %c0_i32, %c0_i32_0 : i32, i32
  }
  func.func @transform_5(%arg0: i32) -> (i32, i32) {
    %c0_i32 = arith.constant 0 : i32
    %c0_i32_0 = arith.constant 0 : i32
    %c0_i32_1 = arith.constant 0 : i32
    return %c0_i32, %c0_i32_0 : i32, i32
  }
  func.func @transform_6(%arg0: i32) -> (i32, i32) {
    %c0_i32 = arith.constant 0 : i32
    %c0_i32_0 = arith.constant 0 : i32
    %c0_i32_1 = arith.constant 0 : i32
    return %c0_i32, %c0_i32_0 : i32, i32
  }
  func.func @transform_7(%arg0: i32) -> (i32, i32) {
    %c0_i32 = arith.constant 0 : i32
    %c0_i32_0 = arith.constant 0 : i32
    return %arg0, %c0_i32 : i32, i32
  }
}

</mosaic_0001>

<llo_original>
// kernel: tpu_custom_call.1
$region0: #{tpu_custom_call.1}
  #allocation0 [shape = 'u32[]', space=smem, size = 0x4, offset = 0x4, fixed_abs, tag = 'smem constant byte address 0x4 - core index']
  #allocation1 [shape = 'u32[72,128]{1,0:T(1,128)}', space=vmem, size = 0x9000, scoped, tag = 'internal scratch']
  %s0 = inlined_call_operand.vmem [shape: f32[16,2], index: 0, kind: input, shape index: {}]
  %s1 = inlined_call_operand.vmem [shape: s32[16,1], index: 1, kind: input, shape index: {}]
  %s2 = inlined_call_operand.vmem [shape: f32[2,128], index: 2, kind: input, shape index: {}]
  %s3 = inlined_call_operand.vmem [shape: f32[1,128], index: 3, kind: input, shape index: {}]
  %s4 = inlined_call_operand.vmem [shape: f32[32,128], index: 4, kind: input, shape index: {}]
  %s5 = inlined_call_operand.vmem [shape: f32[1,128], index: 5, kind: input, shape index: {}]
  %s6 = inlined_call_operand.vmem [shape: f32[1,128], index: 6, kind: input, shape index: {}]
  %s7 = inlined_call_operand.hbm [shape: f32[16,128], index: 7, kind: output, shape index: {}]
  %s8 = sld [smem:[#allocation0]]
  $region38: #{tpu_custom_call.1} parent=0
    _
  %s10 = ssub.s32 1, %s8
  %s11 = scalar_select 0, %s10, %s8
  $region1: #{tpu_custom_call.1} parent=0
    #allocation2 [shape = 'u8[8192]{0}', space=vmem, size = 0x2000, scoped, tag = 'output window, operand 0, single buffered']
    #allocation3 [shape = 's32[1]{0}', space=sflag, size = 0x4, scoped, tag = 'scoped memory for tpu_custom_call.1']
    %12 = vsyncpa [#allocation3], 0
    // Predicated region
    $region2: #{tpu_custom_call.1} parent=1 // pred_check
      _
    $region3: #{tpu_custom_call.1} parent=1 // pred_check_branch
      %14 = sbr.rel (0) target = $region5
    $region4: #{tpu_custom_call.1} parent=1 // pred_region
      _
    $region5: #{tpu_custom_call.1} parent=1 // pred_fallthru
      _
    // Predicated region
    $region6: #{tpu_custom_call.1} parent=1 // pred_check
      _
    $region7: #{tpu_custom_call.1} parent=1 // pred_check_branch
      %16 = sbr.rel (0) target = $region9
    $region8: #{tpu_custom_call.1} parent=1 // pred_region
      _
    $region9: #{tpu_custom_call.1} parent=1 // pred_fallthru
      _
    // Predicated region
    $region10: #{tpu_custom_call.1} parent=1 // pred_check
      _
    $region11: #{tpu_custom_call.1} parent=1 // pred_check_branch
      %18 = sbr.rel (0) target = $region13
    $region12: #{tpu_custom_call.1} parent=1 // pred_region
      _
    $region13: #{tpu_custom_call.1} parent=1 // pred_fallthru
      _
    // Predicated region
    $region14: #{tpu_custom_call.1} parent=1 // pred_check
      _
    $region15: #{tpu_custom_call.1} parent=1 // pred_check_branch
      %20 = sbr.rel (0) target = $region17
    $region16: #{tpu_custom_call.1} parent=1 // pred_region
      _
    $region17: #{tpu_custom_call.1} parent=1 // pred_fallthru
      _
    // Predicated region
    $region18: #{tpu_custom_call.1} parent=1 // pred_check
      _
    $region19: #{tpu_custom_call.1} parent=1 // pred_check_branch
      %22 = sbr.rel (0) target = $region21
    $region20: #{tpu_custom_call.1} parent=1 // pred_region
      _
    $region21: #{tpu_custom_call.1} parent=1 // pred_fallthru
      _
    // Predicated region
    $region22: #{tpu_custom_call.1} parent=1 // pred_check
      _
    $region23: #{tpu_custom_call.1} parent=1 // pred_check_branch
      %24 = sbr.rel (0) target = $region25
    $region24: #{tpu_custom_call.1} parent=1 // pred_region
      _
    $region25: #{tpu_custom_call.1} parent=1 // pred_fallthru
      _
    // Predicated region
    $region26: #{tpu_custom_call.1} parent=1 // pred_check
      _
    $region27: #{tpu_custom_call.1} parent=1 // pred_check_branch
      %26 = sbr.rel (0) target = $region29
    $region28: #{tpu_custom_call.1} parent=1 // pred_region
      _
    $region29: #{tpu_custom_call.1} parent=1 // pred_fallthru
      _
    %v27 = vld [vmem:[%s1] sm:$0xff]
    %v28 = vld [vmem:[%s1 + $0x8] sm:$0xff]
    %vm29 = vcmp.eq.s32.totalorder %v27, 0
    %vm30 = vcmp.eq.s32.totalorder %v28, 0
    %vm31 = vcmp.eq.s32.totalorder %v27, 1
    %vm32 = vcmp.eq.s32.totalorder %v28, 1
    %vm33 = vcmp.eq.s32.totalorder %v27, 2
    %vm34 = vcmp.eq.s32.totalorder %v28, 2
    %vm35 = vmor %vm29, %vm31
    %vm36 = vmor %vm30, %vm32
    %vm37 = vmor %vm35, %vm33
    %vm38 = vmor %vm36, %vm34
    %v39 = vsel %vm37, 0, %v27
    %v40 = vsel %vm38, 0, %v28
    %v41 = vlaneseq
    %v42 = vand.u32 %v41, 127
    %43 = vset.pattern.permute.xlu0 0
    %44 = vperm.xlu0 %43, %v39
    %v45 = vpop.permute.xlu0 %44
    %46 = vset.pattern.permute.xlu0 0
    %47 = vperm.xlu0 %46, %v40
    %v48 = vpop.permute.xlu0 %47
    %vm49 = vcmp.eq.s32.totalorder %v42, %v45
    %vm50 = vcmp.eq.s32.totalorder %v42, %v48
    %v51 = vsel %vm49, 1, 0
    %v52 = vsel %vm50, 1, 0
    %v53 = vcvt.s32.f32 %v51
    %v54 = vcvt.s32.f32 %v52
    %v55 = vld [vmem:[%s4] sm:$0xff]
    %v56 = vld [vmem:[%s4 + $0x8] sm:$0xff]
    %v57 = vld [vmem:[%s4 + $0x10] sm:$0xff]
    %v58 = vld [vmem:[%s4 + $0x18] sm:$0xff]
    %vm59 = vcmask 261120
    %v61 = vsel %vm59, %v53, 0
    %v64 = vsel %vm59, %v54, 0
    %66 = vmatpush.msra.mxu0 0.0
    %67 = vmatpush.msra.mxu0 0.0
    %68 = vmatpush.msra.mxu0 0.0
    %69 = vmatpush.msra.mxu0 0.0
    %70 = vmatpush.msra.mxu0 0.0
    %71 = vmatpush.msra.mxu0 0.0
    %72 = vmatpush.msra.mxu0 0.0
    %73 = vmatpush.msra.mxu0 0.0
    %74 = vmatpush.msra.mxu0 0.0
    %75 = vmatpush.msra.mxu0 0.0
    %76 = vmatpush.msra.mxu0 0.0
    %77 = vmatpush.msra.mxu0 0.0
    %v78 = vand.u32 %v58, 4294901760
    %79 = vmatpush.msra.mxu0 %v78
    %v80 = vand.u32 %v57, 4294901760
    %81 = vmatpush.msra.mxu0 %v80
    %v82 = vand.u32 %v56, 4294901760
    %83 = vmatpush.msra.mxu0 %v82
    %v84 = vand.u32 %v55, 4294901760
    %85 = vmatpush.msra.mxu0 %v84
    %v86 = vand.u32 %v61, 4294901760
    %v87 = vsub.f32 %v61, %v86
    %v88 = vand.u32 %v87, 4294901760
    %v89 = vsub.f32 %v87, %v88
    %v90 = vand.u32 %v89, 4294901760
    %91 = vmatmul.f32.gmra.mxu0 %v90
    %v92 = vpop.f32.mrf.mxu0
    %v93 = vadd.f32 0.0, %v92
    %v94 = vand.u32 %v64, 4294901760
    %v95 = vsub.f32 %v64, %v94
    %v96 = vand.u32 %v95, 4294901760
    %v97 = vsub.f32 %v95, %v96
    %v98 = vand.u32 %v97, 4294901760
    %99 = vmatmul.f32.gmra.mxu0 %v98
    %v100 = vpop.f32.mrf.mxu0
    %v101 = vadd.f32 0.0, %v100
    %102 = vdwg.mxu0
    %103 = vmatpush.msra.mxu0 0.0
    %104 = vmatpush.msra.mxu0 0.0
    %105 = vmatpush.msra.mxu0 0.0
    %106 = vmatpush.msra.mxu0 0.0
    %107 = vmatpush.msra.mxu0 0.0
    %108 = vmatpush.msra.mxu0 0.0
    %109 = vmatpush.msra.mxu0 0.0
    %110 = vmatpush.msra.mxu0 0.0
    %111 = vmatpush.msra.mxu0 0.0
    %112 = vmatpush.msra.mxu0 0.0
    %113 = vmatpush.msra.mxu0 0.0
    %114 = vmatpush.msra.mxu0 0.0
    %v115 = vand.u32 %v58, 4294901760
    %v116 = vsub.f32 %v58, %v115
    %v117 = vand.u32 %v116, 4294901760
    %v118 = vsub.f32 %v116, %v117
    %v119 = vand.u32 %v118, 4294901760
    %120 = vmatpush.msra.mxu0 %v119
    %v121 = vand.u32 %v57, 4294901760
    %v122 = vsub.f32 %v57, %v121
    %v123 = vand.u32 %v122, 4294901760
    %v124 = vsub.f32 %v122, %v123
    %v125 = vand.u32 %v124, 4294901760
    %126 = vmatpush.msra.mxu0 %v125
    %v127 = vand.u32 %v56, 4294901760
    %v128 = vsub.f32 %v56, %v127
    %v129 = vand.u32 %v128, 4294901760
    %v130 = vsub.f32 %v128, %v129
    %v131 = vand.u32 %v130, 4294901760
    %132 = vmatpush.msra.mxu0 %v131
    %v133 = vand.u32 %v55, 4294901760
    %v134 = vsub.f32 %v55, %v133
    %v135 = vand.u32 %v134, 4294901760
    %v136 = vsub.f32 %v134, %v135
    %v137 = vand.u32 %v136, 4294901760
    %138 = vmatpush.msra.mxu0 %v137
    %v139 = vand.u32 %v61, 4294901760
    %140 = vmatmul.f32.gmra.mxu0 %v139
    %v141 = vpop.f32.mrf.mxu0
    %v142 = vadd.f32 %v93, %v141
    %v143 = vand.u32 %v64, 4294901760
    %144 = vmatmul.f32.gmra.mxu0 %v143
    %v145 = vpop.f32.mrf.mxu0
    %v146 = vadd.f32 %v101, %v145
    %147 = vdwg.mxu0
    %148 = vmatpush.msra.mxu0 0.0
    %149 = vmatpush.msra.mxu0 0.0
    %150 = vmatpush.msra.mxu0 0.0
    %151 = vmatpush.msra.mxu0 0.0
    %152 = vmatpush.msra.mxu0 0.0
    %153 = vmatpush.msra.mxu0 0.0
    %154 = vmatpush.msra.mxu0 0.0
    %155 = vmatpush.msra.mxu0 0.0
    %156 = vmatpush.msra.mxu0 0.0
    %157 = vmatpush.msra.mxu0 0.0
    %158 = vmatpush.msra.mxu0 0.0
    %159 = vmatpush.msra.mxu0 0.0
    %v160 = vand.u32 %v58, 4294901760
    %v161 = vsub.f32 %v58, %v160
    %162 = vmatpush.msra.mxu0 %v161
    %v163 = vand.u32 %v57, 4294901760
    %v164 = vsub.f32 %v57, %v163
    %165 = vmatpush.msra.mxu0 %v164
    %v166 = vand.u32 %v56, 4294901760
    %v167 = vsub.f32 %v56, %v166
    %168 = vmatpush.msra.mxu0 %v167
    %v169 = vand.u32 %v55, 4294901760
    %v170 = vsub.f32 %v55, %v169
    %171 = vmatpush.msra.mxu0 %v170
    %v172 = vand.u32 %v61, 4294901760
    %v173 = vsub.f32 %v61, %v172
    %174 = vmatmul.f32.gmra.mxu0 %v173
    %v175 = vpop.f32.mrf.mxu0
    %v176 = vadd.f32 %v142, %v175
    %v177 = vand.u32 %v64, 4294901760
    %v178 = vsub.f32 %v64, %v177
    %179 = vmatmul.f32.gmra.mxu0 %v178
    %v180 = vpop.f32.mrf.mxu0
    %v181 = vadd.f32 %v146, %v180
    %182 = vdwg.mxu0
    %183 = vmatpush.msra.mxu0 0.0
    %184 = vmatpush.msra.mxu0 0.0
    %185 = vmatpush.msra.mxu0 0.0
    %186 = vmatpush.msra.mxu0 0.0
    %187 = vmatpush.msra.mxu0 0.0
    %188 = vmatpush.msra.mxu0 0.0
    %189 = vmatpush.msra.mxu0 0.0
    %190 = vmatpush.msra.mxu0 0.0
    %191 = vmatpush.msra.mxu0 0.0
    %192 = vmatpush.msra.mxu0 0.0
    %193 = vmatpush.msra.mxu0 0.0
    %194 = vmatpush.msra.mxu0 0.0
    %v195 = vand.u32 %v58, 4294901760
    %196 = vmatpush.msra.mxu0 %v195
    %v197 = vand.u32 %v57, 4294901760
    %198 = vmatpush.msra.mxu0 %v197
    %v199 = vand.u32 %v56, 4294901760
    %200 = vmatpush.msra.mxu0 %v199
    %v201 = vand.u32 %v55, 4294901760
    %202 = vmatpush.msra.mxu0 %v201
    %v203 = vand.u32 %v61, 4294901760
    %v204 = vsub.f32 %v61, %v203
    %v205 = vand.u32 %v204, 4294901760
    %206 = vmatmul.f32.gmra.mxu0 %v205
    %v207 = vpop.f32.mrf.mxu0
    %v208 = vadd.f32 %v176, %v207
    %v209 = vand.u32 %v64, 4294901760
    %v210 = vsub.f32 %v64, %v209
    %v211 = vand.u32 %v210, 4294901760
    %212 = vmatmul.f32.gmra.mxu0 %v211
    %v213 = vpop.f32.mrf.mxu0
    %v214 = vadd.f32 %v181, %v213
    %215 = vdwg.mxu0
    %216 = vmatpush.msra.mxu0 0.0
    %217 = vmatpush.msra.mxu0 0.0
    %218 = vmatpush.msra.mxu0 0.0
    %219 = vmatpush.msra.mxu0 0.0
    %220 = vmatpush.msra.mxu0 0.0
    %221 = vmatpush.msra.mxu0 0.0
    %222 = vmatpush.msra.mxu0 0.0
    %223 = vmatpush.msra.mxu0 0.0
    %224 = vmatpush.msra.mxu0 0.0
    %225 = vmatpush.msra.mxu0 0.0
    %226 = vmatpush.msra.mxu0 0.0
    %227 = vmatpush.msra.mxu0 0.0
    %v228 = vand.u32 %v58, 4294901760
    %v229 = vsub.f32 %v58, %v228
    %v230 = vand.u32 %v229, 4294901760
    %231 = vmatpush.msra.mxu0 %v230
    %v232 = vand.u32 %v57, 4294901760
    %v233 = vsub.f32 %v57, %v232
    %v234 = vand.u32 %v233, 4294901760
    %235 = vmatpush.msra.mxu0 %v234
    %v236 = vand.u32 %v56, 4294901760
    %v237 = vsub.f32 %v56, %v236
    %v238 = vand.u32 %v237, 4294901760
    %239 = vmatpush.msra.mxu0 %v238
    %v240 = vand.u32 %v55, 4294901760
    %v241 = vsub.f32 %v55, %v240
    %v242 = vand.u32 %v241, 4294901760
    %243 = vmatpush.msra.mxu0 %v242
    %v244 = vand.u32 %v61, 4294901760
    %245 = vmatmul.f32.gmra.mxu0 %v244
    %v246 = vpop.f32.mrf.mxu0
    %v247 = vadd.f32 %v208, %v246
    %v248 = vand.u32 %v64, 4294901760
    %249 = vmatmul.f32.gmra.mxu0 %v248
    %v250 = vpop.f32.mrf.mxu0
    %v251 = vadd.f32 %v214, %v250
    %252 = vdwg.mxu0
    %253 = vmatpush.msra.mxu0 0.0
    %254 = vmatpush.msra.mxu0 0.0
    %255 = vmatpush.msra.mxu0 0.0
    %256 = vmatpush.msra.mxu0 0.0
    %257 = vmatpush.msra.mxu0 0.0
    %258 = vmatpush.msra.mxu0 0.0
    %259 = vmatpush.msra.mxu0 0.0
    %260 = vmatpush.msra.mxu0 0.0
    %261 = vmatpush.msra.mxu0 0.0
    %262 = vmatpush.msra.mxu0 0.0
    %263 = vmatpush.msra.mxu0 0.0
    %264 = vmatpush.msra.mxu0 0.0
    %v265 = vand.u32 %v58, 4294901760
    %266 = vmatpush.msra.mxu0 %v265
    %v267 = vand.u32 %v57, 4294901760
    %268 = vmatpush.msra.mxu0 %v267
    %v269 = vand.u32 %v56, 4294901760
    %270 = vmatpush.msra.mxu0 %v269
    %v271 = vand.u32 %v55, 4294901760
    %272 = vmatpush.msra.mxu0 %v271
    %v273 = vand.u32 %v61, 4294901760
    %274 = vmatmul.f32.gmra.mxu0 %v273
    %v275 = vpop.f32.mrf.mxu0
    %v276 = vadd.f32 %v247, %v275
    %v277 = vand.u32 %v64, 4294901760
    %278 = vmatmul.f32.gmra.mxu0 %v277
    %v279 = vpop.f32.mrf.mxu0
    %v280 = vadd.f32 %v251, %v279
    %281 = vdwg.mxu0
    %v282 = vld [vmem:[%s5] sm:$0x1]
    %v283 = vsel %vm33, 1, 0
    %v284 = vsel %vm34, 1, 0
    %285 = vset.pattern.permute.xlu0 0
    %286 = vperm.xlu0 %285, %v283
    %v287 = vpop.permute.xlu0 %286
    %288 = vset.pattern.permute.xlu0 0
    %289 = vperm.xlu0 %288, %v284
    %v290 = vpop.permute.xlu0 %289
    %vm291 = vcmp.eq.s32.totalorder %v287, 1
    %vm292 = vcmp.eq.s32.totalorder %v290, 1
    %v294 = vperm.slane %v282, 0
    %v296 = vsel %vm291, %v294, %v276
    %v297 = vsel %vm292, %v294, %v280
    %v298 = vld [vmem:[%s0] sm:$0xff]
    %v299 = vld [vmem:[%s0 + $0x8] sm:$0xff]
    %v300 = vld [vmem:[%s2] sm:$0x1]
    %302 = vset.pattern.permute.xlu0 0
    %303 = vperm.xlu0 %302, %v298
    %v304 = vpop.permute.xlu0 %303
    %307 = vset.pattern.permute.xlu0 0
    %308 = vperm.xlu0 %307, %v299
    %v309 = vpop.permute.xlu0 %308
    %v311 = vperm.slane %v300, 0
    %v312 = vmul.f32 %v304, %v311
    %v313 = vmul.f32 %v309, %v311
    %v314 = vld [vmem:[%s2 + $0x1] sm:$0x1]
    %315 = vset.pattern.permute.xlu0 1
    %316 = vperm.xlu0 %315, %v298
    %v317 = vpop.permute.xlu0 %316
    %319 = vset.pattern.permute.xlu0 1
    %320 = vperm.xlu0 %319, %v299
    %v321 = vpop.permute.xlu0 %320
    %v323 = vperm.slane %v314, 0
    %v324 = vmul.f32 %v317, %v323
    %v325 = vmul.f32 %v321, %v323
    %v326 = vadd.f32 %v312, %v324
    %v327 = vadd.f32 %v313, %v325
    %v328 = vld [vmem:[%s3] sm:$0x1]
    %v330 = vperm.slane %v328, 0
    %v332 = vadd.f32 %v326, %v330
    %v333 = vadd.f32 %v327, %v330
    %v334 = vadd.f32 %v332, %v296
    %v335 = vadd.f32 %v333, %v297
    %v336 = vld [vmem:[%s6] sm:$0x1]
    %v337 = vsel %vm29, 1, 0
    %v338 = vsel %vm30, 1, 0
    %339 = vset.pattern.permute.xlu0 0
    %340 = vperm.xlu0 %339, %v337
    %v341 = vpop.permute.xlu0 %340
    %342 = vset.pattern.permute.xlu0 0
    %343 = vperm.xlu0 %342, %v338
    %v344 = vpop.permute.xlu0 %343
    %vm345 = vcmp.eq.s32.totalorder %v341, 1
    %vm346 = vcmp.eq.s32.totalorder %v344, 1
    %v347 = vsel %vm345, 0.0, %v334
    %v348 = vsel %vm346, 0.0, %v335
    %v349 = vsel %vm31, 1, 0
    %v350 = vsel %vm32, 1, 0
    %351 = vset.pattern.permute.xlu0 0
    %352 = vperm.xlu0 %351, %v349
    %v353 = vpop.permute.xlu0 %352
    %354 = vset.pattern.permute.xlu0 0
    %355 = vperm.xlu0 %354, %v350
    %v356 = vpop.permute.xlu0 %355
    %vm357 = vcmp.eq.s32.totalorder %v353, 1
    %vm358 = vcmp.eq.s32.totalorder %v356, 1
    %v360 = vperm.slane %v336, 0
    %v362 = vsel %vm357, %v360, %v347
    %v363 = vsel %vm358, %v360, %v348
    %364 = vst [vmem:[#allocation2] sm:$0xff] %v362
    %365 = vst [vmem:[#allocation2 + $0x8] sm:$0xff] %v363
    // Predicated region
    $region30: #{tpu_custom_call.1} parent=1 // pred_check
      _
    $region31: #{tpu_custom_call.1} parent=1 // pred_check_branch
      %367 = sbr.rel (0) target = $region33
    $region32: #{tpu_custom_call.1} parent=1 // pred_region
      %369 = vsyncadd [#allocation3], 0
      %s370 = sshll.u32 [#allocation2], 4
      %s371 = int_to_ptr.vmem [resolvable:$true] %s370
      %s372 = sshll.u32 %s7, 4
      %s373 = int_to_ptr.hbm [resolvable:$true] %s372
      %378 = dma.vmem_to_hbm [thread:$0]  %s371, 256, %s373, [#allocation3], 128, 128, 8
    $region33: #{tpu_custom_call.1} parent=1 // pred_fallthru
      _
    // Predicated region
    $region34: #{tpu_custom_call.1} parent=1 // pred_check
      _
    $region35: #{tpu_custom_call.1} parent=1 // pred_check_branch
      %380 = sbr.rel (0) target = $region37
    $region36: #{tpu_custom_call.1} parent=1 // pred_region
      %382 = dma.done [#allocation3], 256
    $region37: #{tpu_custom_call.1} parent=1 // pred_fallthru
      _
    %383 = vsyncpa [#allocation3], 1

</llo_original>
